<compile_context>
chip_gen: v5e
topology: v5e:2x2
jax: 0.10.0
libtpu: 0.0.40
codegen_flags: <defaults>
</compile_context>

<pallas_src>
import functools

import jax
import jax.numpy as jnp
from jax.experimental import pallas as pl
from jax.experimental.pallas import tpu as pltpu

LANES = 128          # TPU lane width
HP = 128             # padded hidden / action width used inside the kernel
SLAB_W = 2 * LANES   # parameter-slab lane width (two 128-lane column groups)


def _rup(x, m):
    return (x + m - 1) // m * m


def _slab_layout(state_size):
    """Row offsets (8-aligned) inside the (R, 256) bf16 parameter slab.

    Column group 0 (lanes   0:128): W1^T rows, b1, W2^T rows, b2
    Column group 1 (lanes 128:256): W3x^T rows, b3, W3h^T rows, 0
    so the fc1 matmul and the skip matmul share one x @ (S, 256) dot.
    """
    s8 = _rup(state_size, 8)
    o_w13 = 0                  # rows [0, S)        : [W1^T | W3x^T]  (S, 256)
    o_b13 = o_w13 + s8         # row  o_b13         : [b1   | b3   ]  (1, 256)
    o_w2h = o_b13 + 8          # rows [o_w2h, +128) : [W2^T | W3h^T]  (128, 256)
    o_b2 = o_w2h + HP          # row  o_b2          : [b2   | 0    ]  (1, 256)
    n_rows = o_b2 + 8
    return (o_w13, o_b13, o_w2h, o_b2), n_rows


def pack_params(w1, b1, w2, b2, w3, b3, state_size, hidden_size, action_size):
    """Pack PyTorch-layout params into one lane-dense (R, 256) bf16 slab."""
    S, H, A = state_size, hidden_size, action_size
    assert H <= HP and A <= LANES, "this packer assumes hidden/action <= 128"
    offs, n_rows = _slab_layout(S)
    o_w13, o_b13, o_w2h, o_b2 = offs
    slab = jnp.zeros((n_rows, SLAB_W), jnp.float32)
    # Column group 0: fc1 / fc2 path.
    slab = slab.at[o_w13:o_w13 + S, :H].set(w1.T)                 # W1^T
    slab = slab.at[o_b13, :H].set(b1)                             # b1
    slab = slab.at[o_w2h:o_w2h + H, :H].set(w2.T)                 # W2^T
    slab = slab.at[o_b2, :H].set(b2)                              # b2
    # Column group 1: output layer, split into skip (x) and h2 parts.
    slab = slab.at[o_w13:o_w13 + S, HP:HP + A].set(w3[:, :S].T)   # W3[:, :S]^T
    slab = slab.at[o_b13, HP:HP + A].set(b3)                      # b3
    slab = slab.at[o_w2h:o_w2h + H, HP:HP + A].set(w3[:, S:].T)   # W3[:, S:]^T
    return slab.astype(jnp.bfloat16)


def _supports_bf16_eup():
    """bf16 tanh is profitable on v6e/v7x; keep f32 tanh on v5e and older."""
    try:
        kind = jax.devices()[0].device_kind.lower()
    except Exception:
        return False
    return not any(tag in kind for tag in ("v2", "v3", "v4", "v5"))


def _qnet_kernel(x_ref, p_ref, o_ref, *, state_size, offs, bf16_tanh):
    o_w13, o_b13, o_w2h, o_b2 = offs
    S = state_size

    x = x_ref[...].astype(jnp.bfloat16)                        # (TB, S) bf16

    w1_w3x = p_ref[o_w13:o_w13 + S, :]                         # (S, 256) bf16
    b1_b3 = p_ref[o_b13:o_b13 + 1, :].astype(jnp.float32)      # (1, 256)
    w2 = p_ref[o_w2h:o_w2h + HP, :HP]                          # (128, 128) bf16
    w3h = p_ref[o_w2h:o_w2h + HP, HP:]                         # (128, 128) bf16
    b2 = p_ref[o_b2:o_b2 + 1, :HP].astype(jnp.float32)         # (1, 128)

    # Fused x-side matmul: [h1_pre | skip] = x @ [W1^T | W3x^T] + [b1 | b3]
    xw = jnp.dot(x, w1_w3x, preferred_element_type=jnp.float32) + b1_b3
    h1_pre = xw[:, :HP]                                        # fc1 pre-act (f32)
    skip = xw[:, HP:]                                          # x @ W3x^T + b3

    if bf16_tanh:
        h1 = jnp.tanh(h1_pre.astype(jnp.bfloat16))             # bf16 EUP (v6e/v7x)
    else:
        h1 = jnp.tanh(h1_pre).astype(jnp.bfloat16)             # f32 EUP (v5e)

    h2_pre = jnp.dot(h1, w2, preferred_element_type=jnp.float32) + b2
    if bf16_tanh:
        h2 = jnp.tanh(h2_pre.astype(jnp.bfloat16))
    else:
        h2 = jnp.tanh(h2_pre).astype(jnp.bfloat16)

    out = skip + jnp.dot(h2, w3h, preferred_element_type=jnp.float32)
    o_ref[...] = out.astype(o_ref.dtype)                       # lane-dense bf16 store


def qnetwork_skip_forward(x, slab, state_size, hidden_size, action_size, *,
                          block_b=1024):
    """Batched forward pass: x (B, state_size) f32 -> (B, action_size) f32.

    Call under jax.jit so the final slice/cast fuses with the consumer instead
    of materializing an extra HBM pass.
    """
    B, S = x.shape
    assert S == state_size
    assert hidden_size <= HP and action_size <= LANES, \
        "kernel assumes hidden_size <= 128 and action_size <= 128"
    offs, n_rows = _slab_layout(state_size)
    assert slab.shape == (n_rows, SLAB_W) and slab.dtype == jnp.bfloat16

    # Batch tile: multiple of 8 sublanes, clamped to the (padded) batch.
    b8 = _rup(B, 8)
    tb = _rup(min(block_b, b8), 8)
    # Prefer >= 2 batch tiles so the "parallel" axis can shard across the two
    # TensorCores on v7x (no-op on single-TC v5e/v6e).
    if b8 // tb < 2 and b8 >= 16:
        tb = _rup((b8 + 1) // 2, 8)
    b_pad = _rup(B, tb)
    if b_pad != B:
        x = jnp.pad(x, ((0, b_pad - B), (0, 0)))
    grid = (b_pad // tb,)

    kernel = functools.partial(
        _qnet_kernel, state_size=S, offs=offs, bf16_tanh=_supports_bf16_eup())

    out = pl.pallas_call(
        kernel,
        # bf16 writeback halves the dominant HBM traffic; still 128-lane dense.
        out_shape=jax.ShapeDtypeStruct((b_pad, LANES), jnp.bfloat16),
        grid=grid,
        in_specs=[
            # Pipelined batch tile of the inputs.
            pl.BlockSpec((tb, S), lambda i: (i, 0)),
            # Single parameter slab, constant index_map -> fetched once,
            # VMEM-resident across batch tiles.
            pl.BlockSpec((n_rows, SLAB_W), lambda i: (0, 0)),
        ],
        out_specs=pl.BlockSpec((tb, LANES), lambda i: (i, 0)),
        compiler_params=pltpu.CompilerParams(
            dimension_semantics=("parallel",),
            # v5e's default scoped VMEM is 16 MiB; only needed for big tiles.
            vmem_limit_bytes=(48 << 20) if tb >= 2048 else None,
        ),
    )(x, slab)

    # Left to fuse into the caller's jit (lazy slice + cast back to f32).
    return out[:B, :action_size].astype(jnp.float32)


def init_params(key, state_size, hidden_size, action_size):
    """Deterministic PyTorch-style init, PyTorch layout: W (out, in), b (out,)."""
    ks = jax.random.split(key, 6)

    def linear(kw, kb, fan_in, fan_out):
        bound = 1.0 / jnp.sqrt(fan_in)
        w = jax.random.uniform(kw, (fan_out, fan_in), jnp.float32, -bound, bound)
        b = jax.random.uniform(kb, (fan_out,), jnp.float32, -bound, bound)
        return w, b

    w1, b1 = linear(ks[0], ks[1], state_size, hidden_size)
    w2, b2 = linear(ks[2], ks[3], hidden_size, hidden_size)
    w3, b3 = linear(ks[4], ks[5], hidden_size + state_size, action_size)
    return w1, b1, w2, b2, w3, b3


if __name__ == "__main__":
    batch = 64
    state_size = 8
    hidden_size = 32
    action_size = 4

    key = jax.random.PRNGKey(0)
    kx, kp = jax.random.split(key)
    x = jax.random.normal(kx, (batch, state_size), jnp.float32)
    w1, b1, w2, b2, w3, b3 = init_params(kp, state_size, hidden_size, action_size)

    slab = pack_params(w1, b1, w2, b2, w3, b3, state_size, hidden_size, action_size)

    # block_b=32 -> grid=(2,) to exercise the pipelined, multi-tile batch grid.
    fwd = jax.jit(functools.partial(
        qnetwork_skip_forward,
        state_size=state_size, hidden_size=hidden_size,
        action_size=action_size, block_b=32))
    out = jax.block_until_ready(fwd(x, slab))

    # Pure-JAX f32 reference (matches the PyTorch forward exactly).
    hp = jax.lax.Precision.HIGHEST
    h1 = jnp.tanh(jnp.dot(x, w1.T, precision=hp) + b1)
    h2 = jnp.tanh(jnp.dot(h1, w2.T, precision=hp) + b2)
    cat = jnp.concatenate([x, h2], axis=1)
    ref = jnp.dot(cat, w3.T, precision=hp) + b3

    assert out.shape == (batch, action_size)
    assert out.dtype == jnp.float32
    max_err = float(jnp.max(jnp.abs(out - ref)))
    # bf16 weights / activations / writeback vs f32 HIGHEST reference.
    assert jnp.allclose(out, ref, atol=3e-2, rtol=3e-2), \
        f"mismatch vs reference (max abs err {max_err})"

    print("KERNEL_OK")
</pallas_src>

<mosaic_0001>
module attributes {stable_mosaic.version = 11 : i64} {
  func.func @_qnet_kernel(%arg0: i32, %arg1: memref<32x8xf32, #tpu.memory_space<vmem>>, %arg2: memref<152x256xbf16, #tpu.memory_space<vmem>>, %arg3: memref<32x128xbf16, #tpu.memory_space<vmem>>) attributes {dimension_semantics = [#tpu.dimension_semantics<parallel>], iteration_bounds = array<i64: 2>, scalar_prefetch = 0 : i64, scratch_operands = 0 : i64, tpu.core_type = #tpu.core_type<tc>, window_params = [{transform_indices = @transform_0, window_bounds = array<i64: 32, 8>}, {pipeline_mode = #tpu.pipeline_mode<synchronous>, transform_indices = @transform_1, window_bounds = array<i64: 152, 256>}, {transform_indices = @transform_2, window_bounds = array<i64: 32, 128>}]} {
    %c0 = arith.constant 0 : index
    %c0_0 = arith.constant 0 : index
    %0 = vector.load %arg1[%c0, %c0_0] : memref<32x8xf32, #tpu.memory_space<vmem>>, vector<32x8xf32>
    %1 = arith.truncf %0 : vector<32x8xf32> to vector<32x8xbf16>
    %c0_1 = arith.constant 0 : index
    %c0_2 = arith.constant 0 : index
    %2 = vector.load %arg2[%c0_1, %c0_2] : memref<152x256xbf16, #tpu.memory_space<vmem>>, vector<8x256xbf16>
    %c8 = arith.constant 8 : index
    %c0_3 = arith.constant 0 : index
    %3 = vector.load %arg2[%c8, %c0_3] : memref<152x256xbf16, #tpu.memory_space<vmem>>, vector<1x256xbf16>
    %4 = arith.extf %3 : vector<1x256xbf16> to vector<1x256xf32>
    %c16 = arith.constant 16 : index
    %c0_4 = arith.constant 0 : index
    %5 = vector.load %arg2[%c16, %c0_4] : memref<152x256xbf16, #tpu.memory_space<vmem>>, vector<128x128xbf16>
    %c16_5 = arith.constant 16 : index
    %c128 = arith.constant 128 : index
    %6 = vector.load %arg2[%c16_5, %c128] : memref<152x256xbf16, #tpu.memory_space<vmem>>, vector<128x128xbf16>
    %c144 = arith.constant 144 : index
    %c0_6 = arith.constant 0 : index
    %7 = vector.load %arg2[%c144, %c0_6] : memref<152x256xbf16, #tpu.memory_space<vmem>>, vector<1x128xbf16>
    %8 = arith.extf %7 : vector<1x128xbf16> to vector<1x128xf32>
    %cst = arith.constant dense<0.000000e+00> : vector<32x256xf32>
    %9 = tpu.matmul %1, %2, %cst {dimension_numbers = #tpu.dot_dimension_numbers<[1], [0], [0], [1], [0, 0, 1, 1], [], []>} : vector<32x8xbf16>, vector<8x256xbf16>, vector<32x256xf32> -> vector<32x256xf32>
    %10 = vector.broadcast %4 : vector<1x256xf32> to vector<32x256xf32>
    %11 = arith.addf %9, %10 : vector<32x256xf32>
    %12 = vector.extract_strided_slice %11 {offsets = [0, 0], sizes = [32, 128], strides = [1, 1]} : vector<32x256xf32> to vector<32x128xf32>
    %13 = vector.extract_strided_slice %11 {offsets = [0, 128], sizes = [32, 128], strides = [1, 1]} : vector<32x256xf32> to vector<32x128xf32>
    %14 = arith.truncf %12 : vector<32x128xf32> to vector<32x128xbf16>
    %15 = math.tanh %14 : vector<32x128xbf16>
    %cst_7 = arith.constant dense<0.000000e+00> : vector<32x128xf32>
    %16 = tpu.matmul %15, %5, %cst_7 {dimension_numbers = #tpu.dot_dimension_numbers<[1], [0], [0], [1], [0, 0, 1, 1], [], []>} : vector<32x128xbf16>, vector<128x128xbf16>, vector<32x128xf32> -> vector<32x128xf32>
    %17 = vector.broadcast %8 : vector<1x128xf32> to vector<32x128xf32>
    %18 = arith.addf %16, %17 : vector<32x128xf32>
    %19 = arith.truncf %18 : vector<32x128xf32> to vector<32x128xbf16>
    %20 = math.tanh %19 : vector<32x128xbf16>
    %cst_8 = arith.constant dense<0.000000e+00> : vector<32x128xf32>
    %21 = tpu.matmul %20, %6, %cst_8 {dimension_numbers = #tpu.dot_dimension_numbers<[1], [0], [0], [1], [0, 0, 1, 1], [], []>} : vector<32x128xbf16>, vector<128x128xbf16>, vector<32x128xf32> -> vector<32x128xf32>
    %22 = arith.addf %13, %21 : vector<32x128xf32>
    %23 = arith.truncf %22 : vector<32x128xf32> to vector<32x128xbf16>
    %c0_9 = arith.constant 0 : index
    %c0_10 = arith.constant 0 : index
    %24 = vector.load %arg3[%c0_9, %c0_10] : memref<32x128xbf16, #tpu.memory_space<vmem>>, vector<32x128xbf16>
    tpu.vector_store %arg3[%c0_9, %c0_10], %23 {strides = array<i32>} : memref<32x128xbf16, #tpu.memory_space<vmem>>, vector<32x128xbf16>,
    return
  }
  func.func @transform_0(%arg0: i32) -> (i32, i32) {
    %c0_i32 = arith.constant 0 : i32
    %c0_i32_0 = arith.constant 0 : i32
    return %arg0, %c0_i32 : i32, i32
  }
  func.func @transform_1(%arg0: i32) -> (i32, i32) {
    %c0_i32 = arith.constant 0 : i32
    %c0_i32_0 = arith.constant 0 : i32
    %c0_i32_1 = arith.constant 0 : i32
    return %c0_i32, %c0_i32_0 : i32, i32
  }
  func.func @transform_2(%arg0: i32) -> (i32, i32) {
    %c0_i32 = arith.constant 0 : i32
    %c0_i32_0 = arith.constant 0 : i32
    return %arg0, %c0_i32 : i32, i32
  }
}

</mosaic_0001>

<llo_original>
// kernel: qnetwork_skip_forward.1
$region0: #{qnetwork_skip_forward.1}
  #allocation0 [shape = 'u32[]', space=smem, size = 0x4, offset = 0x4, fixed_abs, tag = 'smem constant byte address 0x4 - core index']
  #allocation1 [shape = 'u32[72,128]{1,0:T(1,128)}', space=vmem, size = 0x9000, scoped, tag = 'internal scratch']
  %s0 = inlined_call_operand.vmem [shape: f32[64,8], index: 0, kind: input, shape index: {}]
  %s1 = inlined_call_operand.hbm [shape: bf16[152,256], index: 1, kind: input, shape index: {}]
  %s2 = inlined_call_operand.vmem [shape: bf16[64,128], index: 2, kind: output, shape index: {}]
  %s3 = sld [smem:[#allocation0]]
  $region45: #{qnetwork_skip_forward.1} parent=0
    _
  %s5 = ssub.s32 1, %s3
  %s6 = scalar_select 0, %s5, %s3
  $region1: #{qnetwork_skip_forward.1} parent=0
    #allocation2 [shape = 'u8[77824]{0}', space=vmem, size = 0x13000, scoped, tag = 'input window, operand 1, single buffered']
    #allocation3 [shape = 's32[2]{0}', space=sflag, size = 0x8, scoped, tag = 'scoped memory for qnetwork_skip_forward.1']
    %7 = vsyncpa [#allocation3], 0
    loop: start=0, step=1, limit=4
    $region2: #{qnetwork_skip_forward.1} parent=1 // loop_pre_header
      _
    $region3: #{qnetwork_skip_forward.1} parent=1 // loop_header
      %s9 = sphi 0, %s13
      %p10 = scmp.ge.s32.totalorder %s9, 4
      %s19 = sphi 0, %s21
      %s22 = sphi 0, %s19
      %s23 = sphi 0, %s22
      %s39 = sphi 0, %s23
      %s43 = sphi 0, %s43
      %s45 = sphi 0, %s43
      %s46 = sphi 0, %s45
      %s60 = sphi 0, %s46
      %s66 = sphi 0, %s68
      %s69 = sphi 0, %s66
      %s70 = sphi 0, %s69
      %s86 = sphi 0, %s70
    $region4: #{qnetwork_skip_forward.1} parent=1 // loop_header_branch
      %12 = sbr.rel (%p10) target = $region8
    $region5: #{qnetwork_skip_forward.1} parent=1 // loop_body
      %s14 = ssub.s32 %s9, 1
      %s15 = ssub.s32 %s9, 2
      %s16 = sadd.s32 %s9, 1
      %s17 = ssub.s32 %s9, %s16
      %p18 = scmp.eq.s32.totalorder %s17, 0
      %s20 = sadd.s32 %s19, 1
      %s21 = scalar_select %p18, %s19, %s20
      %p24 = pneg %p18
      %p25 = scmp.eq.s32.totalorder %s9, 1
      %p26 = por %p24, %p25
      %p27 = scmp.ne.s32.totalorder %s19, %s22
      %p28 = scmp.eq.s32.totalorder %s9, 0
      %p29 = por %p27, %p28
      %p30 = scmp.ne.s32.totalorder %s19, %s22
      %p31 = scmp.eq.s32.totalorder %s14, 1
      %p32 = por %p30, %p31
      %p33 = scmp.ne.s32.totalorder %s22, %s23
      %p34 = scmp.eq.s32.totalorder %s14, 0
      %p35 = por %p33, %p34
      %p36 = scmp.ne.s32.totalorder %s22, %s23
      %p37 = scmp.eq.s32.totalorder %s15, 1
      %p38 = por %p36, %p37
      %p40 = scmp.ne.s32.totalorder %s23, %s39
      %p41 = scmp.eq.s32.totalorder %s15, 0
      %p42 = por %p40, %p41
      %s44 = sadd.s32 %s43, 1
      %p47 = scmp.eq.s32.totalorder %s9, 1
      %p48 = scmp.ne.s32.totalorder %s43, %s45
      %p49 = scmp.eq.s32.totalorder %s9, 0
      %p50 = por %p48, %p49
      %p51 = scmp.ne.s32.totalorder %s43, %s45
      %p52 = scmp.eq.s32.totalorder %s14, 1
      %p53 = por %p51, %p52
      %p54 = scmp.ne.s32.totalorder %s45, %s46
      %p55 = scmp.eq.s32.totalorder %s14, 0
      %p56 = por %p54, %p55
      %p57 = scmp.ne.s32.totalorder %s45, %s46
      %p58 = scmp.eq.s32.totalorder %s15, 1
      %p59 = por %p57, %p58
      %p61 = scmp.ne.s32.totalorder %s46, %s60
      %p62 = scmp.eq.s32.totalorder %s15, 0
      %p63 = por %p61, %p62
      %s64 = ssub.s32 %s9, %s16
      %p65 = scmp.eq.s32.totalorder %s64, 0
      %s67 = sadd.s32 %s66, 1
      %s68 = scalar_select %p65, %s66, %s67
      %p71 = pneg %p65
      %p72 = scmp.eq.s32.totalorder %s9, 1
      %p73 = por %p71, %p72
      %p74 = scmp.ne.s32.totalorder %s66, %s69
      %p75 = scmp.eq.s32.totalorder %s9, 0
      %p76 = por %p74, %p75
      %p77 = scmp.ne.s32.totalorder %s66, %s69
      %p78 = scmp.eq.s32.totalorder %s14, 1
      %p79 = por %p77, %p78
      %p80 = scmp.ne.s32.totalorder %s69, %s70
      %p81 = scmp.eq.s32.totalorder %s14, 0
      %p82 = por %p80, %p81
      %p83 = scmp.ne.s32.totalorder %s69, %s70
      %p84 = scmp.eq.s32.totalorder %s15, 1
      %p85 = por %p83, %p84
      %p87 = scmp.ne.s32.totalorder %s70, %s86
      %p88 = scmp.eq.s32.totalorder %s15, 0
      %p89 = por %p87, %p88
      %p90 = scmp.le.s32.totalorder 1, %s9
      %p91 = scmp.lt.s32.totalorder %s9, 3
      %p92 = pnand %p90, %p91
      %p93 = pneg %p92
      // Predicated region
      $region9: #{qnetwork_skip_forward.1} parent=5 // pred_check
        _
      $region10: #{qnetwork_skip_forward.1} parent=5 // pred_check_branch
        %95 = sbr.rel (%p92) target = $region12
      $region11: #{qnetwork_skip_forward.1} parent=5 // pred_region
        %s96 = ssub.s32 %s9, 1
        // Predicated region
        $region13: #{qnetwork_skip_forward.1} parent=11 // pred_check
          %p97 = pneg %p56
        $region14: #{qnetwork_skip_forward.1} parent=11 // pred_check_branch
          %99 = sbr.rel (%p97) target = $region16
        $region15: #{qnetwork_skip_forward.1} parent=11 // pred_region
          %101 = vsyncadd [#allocation3], 0
          %s102 = sshll.u32 %s1, 4
          %s103 = int_to_ptr.hbm [resolvable:$true] %s102
          %s104 = sshll.u32 [#allocation2], 4
          %s105 = int_to_ptr.vmem [resolvable:$true] %s104
          %110 = dma.hbm_to_vmem [thread:$0]  %s103, 2432, %s105, [#allocation3], 128, 128, 8
        $region16: #{qnetwork_skip_forward.1} parent=11 // pred_fallthru
          _
      $region12: #{qnetwork_skip_forward.1} parent=5 // pred_fallthru
        _
      %p111 = scmp.lt.s32.totalorder %s9, 2
      // Predicated region
      $region17: #{qnetwork_skip_forward.1} parent=5 // pred_check
        %p112 = pneg %p111
      $region18: #{qnetwork_skip_forward.1} parent=5 // pred_check_branch
        %114 = sbr.rel (%p112) target = $region20
      $region19: #{qnetwork_skip_forward.1} parent=5 // pred_region
        // Predicated region
        $region21: #{qnetwork_skip_forward.1} parent=19 // pred_check
          %p115 = pneg %p29
        $region22: #{qnetwork_skip_forward.1} parent=19 // pred_check_branch
          %117 = sbr.rel (%p115) target = $region24
        $region23: #{qnetwork_skip_forward.1} parent=19 // pred_region
          %s118 = smul.u32 4, %s9
          %p119 = scmp.lt.s32.totalorder %s118, 7
          %s120 = scalar_select %p119, %s118, 7
          %s121 = smul.addr %s120, 8
          %s122 = scalar_lea.vmem %s0, %s121
          %s123 = smul.u32 4, %s9
        $region24: #{qnetwork_skip_forward.1} parent=19 // pred_fallthru
          _
      $region20: #{qnetwork_skip_forward.1} parent=5 // pred_fallthru
        _
      %p124 = scmp.le.s32.totalorder 1, %s9
      %p125 = scmp.lt.s32.totalorder %s9, 3
      %p126 = pnand %p124, %p125
      %p127 = pneg %p126
      // Predicated region
      $region25: #{qnetwork_skip_forward.1} parent=5 // pred_check
        _
      $region26: #{qnetwork_skip_forward.1} parent=5 // pred_check_branch
        %129 = sbr.rel (%p126) target = $region28
      $region27: #{qnetwork_skip_forward.1} parent=5 // pred_region
        %s130 = ssub.s32 %s9, 1
        // Predicated region
        $region29: #{qnetwork_skip_forward.1} parent=27 // pred_check
          %p131 = pneg %p56
        $region30: #{qnetwork_skip_forward.1} parent=27 // pred_check_branch
          %133 = sbr.rel (%p131) target = $region32
        $region31: #{qnetwork_skip_forward.1} parent=27 // pred_region
          %135 = dma.done [#allocation3], 2432
        $region32: #{qnetwork_skip_forward.1} parent=27 // pred_fallthru
          _
        %s136 = smul.u32 4, %s14
        %p137 = scmp.lt.s32.totalorder %s136, 7
        %s138 = scalar_select %p137, %s136, 7
        %s139 = smul.addr %s138, 8
        %s140 = scalar_lea.vmem %s0, %s139
        %p141 = pneg %p35
        %p142 = pneg %p32
        %p143 = pneg %p56
        %p144 = pneg %p53
        %p145 = pneg %p82
        %p146 = pneg %p79
        %s147 = smul.u32 4, %s14
        %p148 = scmp.lt.s32.totalorder %s147, 7
        %s149 = scalar_select %p148, %s147, 7
        %s150 = smul.addr %s149, 4
        %s151 = scalar_lea.vmem %s2, %s150
        %s152 = smul.u32 4, %s14
        %p153 = scmp.lt.s32.totalorder %s152, 7
        %s154 = scalar_select %p153, %s152, 7
        %s155 = smul.addr %s154, 8
        %s156 = scalar_lea.vmem %s0, %s155
        %s157 = smul.u32 4, %s14
        %s158 = smul.u32 4, %s14
        %p159 = scmp.lt.s32.totalorder %s158, 7
        %s160 = scalar_select %p159, %s158, 7
        %s161 = smul.addr %s160, 4
        %s162 = scalar_lea.vmem %s2, %s161
        %s163 = smul.u32 4, %s14
        %v165 = vld [vmem:[%s156] sm:$0xff]
        %v166 = vld [vmem:[%s156 + $0x8] sm:$0xff]
        %v167 = vld [vmem:[%s156 + $0x10] sm:$0xff]
        %v168 = vld [vmem:[%s156 + $0x18] sm:$0xff]
        %v169 = vpack.c.bf16 %v166, %v165
        %v170 = vpack.c.bf16 %v168, %v167
        %v171 = vld [vmem:[#allocation2] sm:$0xff]
        %v172 = vld [vmem:[#allocation2 + $0x8] sm:$0x11]
        %v173 = vunpack.c.l.bf16 %v172
        %v174 = vunpack.c.h.bf16 %v172
        %v175 = vld [vmem:[#allocation2 + $0x10] sm:$0xf]
        %v176 = vld [vmem:[#allocation2 + $0x18] sm:$0xf]
        %v177 = vld [vmem:[#allocation2 + $0x20] sm:$0xf]
        %v178 = vld [vmem:[#allocation2 + $0x28] sm:$0xf]
        %v179 = vld [vmem:[#allocation2 + $0x30] sm:$0xf]
        %v180 = vld [vmem:[#allocation2 + $0x38] sm:$0xf]
        %v181 = vld [vmem:[#allocation2 + $0x40] sm:$0xf]
        %v182 = vld [vmem:[#allocation2 + $0x48] sm:$0xf]
        %v183 = vld [vmem:[#allocation2 + $0x50] sm:$0xf]
        %v184 = vld [vmem:[#allocation2 + $0x58] sm:$0xf]
        %v185 = vld [vmem:[#allocation2 + $0x60] sm:$0xf]
        %v186 = vld [vmem:[#allocation2 + $0x68] sm:$0xf]
        %v187 = vld [vmem:[#allocation2 + $0x70] sm:$0xf]
        %v188 = vld [vmem:[#allocation2 + $0x78] sm:$0xf]
        %v189 = vld [vmem:[#allocation2 + $0x80] sm:$0xf]
        %v190 = vld [vmem:[#allocation2 + $0x88] sm:$0xf]
        %v191 = vld [vmem:[#allocation2 + $0x14] sm:$0xf]
        %v192 = vld [vmem:[#allocation2 + $0x1c] sm:$0xf]
        %v193 = vld [vmem:[#allocation2 + $0x24] sm:$0xf]
        %v194 = vld [vmem:[#allocation2 + $0x2c] sm:$0xf]
        %v195 = vld [vmem:[#allocation2 + $0x34] sm:$0xf]
        %v196 = vld [vmem:[#allocation2 + $0x3c] sm:$0xf]
        %v197 = vld [vmem:[#allocation2 + $0x44] sm:$0xf]
        %v198 = vld [vmem:[#allocation2 + $0x4c] sm:$0xf]
        %v199 = vld [vmem:[#allocation2 + $0x54] sm:$0xf]
        %v200 = vld [vmem:[#allocation2 + $0x5c] sm:$0xf]
        %v201 = vld [vmem:[#allocation2 + $0x64] sm:$0xf]
        %v202 = vld [vmem:[#allocation2 + $0x6c] sm:$0xf]
        %v203 = vld [vmem:[#allocation2 + $0x74] sm:$0xf]
        %v204 = vld [vmem:[#allocation2 + $0x7c] sm:$0xf]
        %v205 = vld [vmem:[#allocation2 + $0x84] sm:$0xf]
        %v206 = vld [vmem:[#allocation2 + $0x8c] sm:$0xf]
        %v207 = vld [vmem:[#allocation2 + $0x90] sm:$0x1]
        %v208 = vunpack.c.l.bf16 %v207
        %v209 = vperm.slane %v173, 0
        %v210 = vperm.slane %v174, 0
        %v212 = vunpack.c.l.b16 %v171
        %v213 = vunpack.c.h.b16 %v171
        %v214 = vpack.c.b16 %v212, %v212
        %v215 = vpack.c.b16 %v213, %v213
        %vm216 = vcmask 64512
        %v218 = vsel %vm216, %v169, 0
        %v221 = vsel %vm216, %v170, 0
        %vm223 = vcmask 1043456
        %v225 = vsel %vm223, %v214, 0
        %v228 = vsel %vm223, %v215, 0
        %230 = vmatpush.bf16.msra.mxu0 0
        %231 = vmatpush.bf16.msra.mxu0 0
        %232 = vmatpush.bf16.msra.mxu0 0
        %233 = vmatpush.bf16.msra.mxu0 0
        %234 = vmatpush.bf16.msra.mxu0 0
        %235 = vmatpush.bf16.msra.mxu0 0
        %236 = vmatpush.bf16.msra.mxu0 0
        %237 = vmatpush.bf16.msra.mxu0 %v225
        %238 = vmatmul.bf16.gmra.mxu0 %v218
        %v239 = vpop.f32.mrf.mxu0
        %v240 = vadd.f32 %v209, %v239
        %v241 = vpop.f32.mrf.mxu0
        %v242 = vadd.f32 %v209, %v241
        %243 = vmatmul.bf16.gmra.mxu0 %v221
        %v244 = vpop.f32.mrf.mxu0
        %v245 = vadd.f32 %v209, %v244
        %v246 = vpop.f32.mrf.mxu0
        %v247 = vadd.f32 %v209, %v246
        %248 = vdwg.mxu0
        %249 = vmatpush.bf16.msra.mxu0 0
        %250 = vmatpush.bf16.msra.mxu0 0
        %251 = vmatpush.bf16.msra.mxu0 0
        %252 = vmatpush.bf16.msra.mxu0 0
        %253 = vmatpush.bf16.msra.mxu0 0
        %254 = vmatpush.bf16.msra.mxu0 0
        %255 = vmatpush.bf16.msra.mxu0 0
        %256 = vmatpush.bf16.msra.mxu0 %v228
        %257 = vmatmul.bf16.gmra.mxu0 %v218
        %v258 = vpop.f32.mrf.mxu0
        %v259 = vadd.f32 %v210, %v258
        %v260 = vpop.f32.mrf.mxu0
        %v261 = vadd.f32 %v210, %v260
        %262 = vmatmul.bf16.gmra.mxu0 %v221
        %v263 = vpop.f32.mrf.mxu0
        %v264 = vadd.f32 %v210, %v263
        %v265 = vpop.f32.mrf.mxu0
        %v266 = vadd.f32 %v210, %v265
        %267 = vdwg.mxu0
        %v268 = vpack.c.bf16 %v242, %v240
        %v269 = vpack.c.bf16 %v247, %v245
        %v270 = vunpack.c.l.bf16 %v268
        %v271 = vunpack.c.h.bf16 %v268
        %v272 = vunpack.c.l.bf16 %v269
        %v273 = vunpack.c.h.bf16 %v269
        %v274 = vtanh.pop %v270
        %v275 = vtanh.pop %v271
        %v276 = vtanh.pop %v272
        %v277 = vtanh.pop %v273
        %v278 = vpack.c.bf16 %v275, %v274
        %v279 = vpack.c.bf16 %v277, %v276
        %v280 = vperm.slane %v208, 0
        %v297 = vunpack.c.l.b16 %v175
        %v298 = vunpack.c.l.b16 %v176
        %v299 = vunpack.c.l.b16 %v177
        %v300 = vunpack.c.l.b16 %v178
        %v301 = vunpack.c.l.b16 %v179
        %v302 = vunpack.c.l.b16 %v180
        %v303 = vunpack.c.l.b16 %v181
        %v304 = vunpack.c.l.b16 %v182
        %v305 = vunpack.c.l.b16 %v183
        %v306 = vunpack.c.l.b16 %v184
        %v307 = vunpack.c.l.b16 %v185
        %v308 = vunpack.c.l.b16 %v186
        %v309 = vunpack.c.l.b16 %v187
        %v310 = vunpack.c.l.b16 %v188
        %v311 = vunpack.c.l.b16 %v189
        %v312 = vunpack.c.l.b16 %v190
        %v313 = vpack.c.b16 %v298, %v297
        %v314 = vpack.c.b16 %v300, %v299
        %v315 = vpack.c.b16 %v302, %v301
        %v316 = vpack.c.b16 %v304, %v303
        %v317 = vpack.c.b16 %v306, %v305
        %v318 = vpack.c.b16 %v308, %v307
        %v319 = vpack.c.b16 %v310, %v309
        %v320 = vpack.c.b16 %v312, %v311
        %329 = vmatpush.bf16.msra.mxu0 %v320
        %330 = vmatpush.bf16.msra.mxu0 %v319
        %331 = vmatpush.bf16.msra.mxu0 %v318
        %332 = vmatpush.bf16.msra.mxu0 %v317
        %333 = vmatpush.bf16.msra.mxu0 %v316
        %334 = vmatpush.bf16.msra.mxu0 %v315
        %335 = vmatpush.bf16.msra.mxu0 %v314
        %336 = vmatpush.bf16.msra.mxu0 %v313
        %337 = vmatmul.bf16.gmra.mxu0 %v278
        %v338 = vpop.f32.mrf.mxu0
        %v339 = vadd.f32 %v280, %v338
        %v340 = vpop.f32.mrf.mxu0
        %v341 = vadd.f32 %v280, %v340
        %342 = vmatmul.bf16.gmra.mxu0 %v279
        %v343 = vpop.f32.mrf.mxu0
        %v344 = vadd.f32 %v280, %v343
        %v345 = vpop.f32.mrf.mxu0
        %v346 = vadd.f32 %v280, %v345
        %347 = vdwg.mxu0
        %v348 = vpack.c.bf16 %v341, %v339
        %v349 = vpack.c.bf16 %v346, %v344
        %v350 = vunpack.c.l.bf16 %v348
        %v351 = vunpack.c.h.bf16 %v348
        %v352 = vunpack.c.l.bf16 %v349
        %v353 = vunpack.c.h.bf16 %v349
        %v354 = vtanh.pop %v350
        %v355 = vtanh.pop %v351
        %v356 = vtanh.pop %v352
        %v357 = vtanh.pop %v353
        %v358 = vpack.c.bf16 %v355, %v354
        %v359 = vpack.c.bf16 %v357, %v356
        %v376 = vunpack.c.l.b16 %v191
        %v377 = vunpack.c.l.b16 %v192
        %v378 = vunpack.c.l.b16 %v193
        %v379 = vunpack.c.l.b16 %v194
        %v380 = vunpack.c.l.b16 %v195
        %v381 = vunpack.c.l.b16 %v196
        %v382 = vunpack.c.l.b16 %v197
        %v383 = vunpack.c.l.b16 %v198
        %v384 = vunpack.c.l.b16 %v199
        %v385 = vunpack.c.l.b16 %v200
        %v386 = vunpack.c.l.b16 %v201
        %v387 = vunpack.c.l.b16 %v202
        %v388 = vunpack.c.l.b16 %v203
        %v389 = vunpack.c.l.b16 %v204
        %v390 = vunpack.c.l.b16 %v205
        %v391 = vunpack.c.l.b16 %v206
        %v392 = vpack.c.b16 %v377, %v376
        %v393 = vpack.c.b16 %v379, %v378
        %v394 = vpack.c.b16 %v381, %v380
        %v395 = vpack.c.b16 %v383, %v382
        %v396 = vpack.c.b16 %v385, %v384
        %v397 = vpack.c.b16 %v387, %v386
        %v398 = vpack.c.b16 %v389, %v388
        %v399 = vpack.c.b16 %v391, %v390
        %408 = vmatpush.bf16.msra.mxu0 %v399
        %409 = vmatpush.bf16.msra.mxu0 %v398
        %410 = vmatpush.bf16.msra.mxu0 %v397
        %411 = vmatpush.bf16.msra.mxu0 %v396
        %412 = vmatpush.bf16.msra.mxu0 %v395
        %413 = vmatpush.bf16.msra.mxu0 %v394
        %414 = vmatpush.bf16.msra.mxu0 %v393
        %415 = vmatpush.bf16.msra.mxu0 %v392
        %416 = vmatmul.bf16.gmra.mxu0 %v358
        %v417 = vpop.f32.mrf.mxu0
        %v418 = vadd.f32 0.0, %v417
        %v419 = vpop.f32.mrf.mxu0
        %v420 = vadd.f32 0.0, %v419
        %421 = vmatmul.bf16.gmra.mxu0 %v359
        %v422 = vpop.f32.mrf.mxu0
        %v423 = vadd.f32 0.0, %v422
        %v424 = vpop.f32.mrf.mxu0
        %v425 = vadd.f32 0.0, %v424
        %426 = vdwg.mxu0
        %v427 = vadd.f32 %v259, %v418
        %v428 = vadd.f32 %v261, %v420
        %v429 = vadd.f32 %v264, %v423
        %v430 = vadd.f32 %v266, %v425
        %v431 = vpack.c.bf16 %v427, %v427
        %v432 = vpack.c.bf16 %v428, %v428
        %v433 = vpack.c.bf16 %v429, %v429
        %v434 = vpack.c.bf16 %v430, %v430
        %435 = vst [vmem:[%s162] sm:$0xf] %v431
        %436 = vst [vmem:[%s162 + $0x4] sm:$0xf] %v432
        %437 = vst [vmem:[%s162 + $0x8] sm:$0xf] %v433
        %438 = vst [vmem:[%s162 + $0xc] sm:$0xf] %v434
        %s439 = smul.u32 4, %s14
        %p440 = scmp.lt.s32.totalorder %s439, 7
        %s441 = scalar_select %p440, %s439, 7
        %s442 = smul.addr %s441, 4
        %s443 = scalar_lea.vmem %s2, %s442
        // Predicated region
        $region33: #{qnetwork_skip_forward.1} parent=27 // pred_check
          %p444 = pneg %p79
        $region34: #{qnetwork_skip_forward.1} parent=27 // pred_check_branch
          %446 = sbr.rel (%p444) target = $region36
        $region35: #{qnetwork_skip_forward.1} parent=27 // pred_region
          %s447 = smul.u32 4, %s14
        $region36: #{qnetwork_skip_forward.1} parent=27 // pred_fallthru
          _
      $region28: #{qnetwork_skip_forward.1} parent=5 // pred_fallthru
        _
      %p448 = scmp.le.s32.totalorder 2, %s9
      // Predicated region
      $region37: #{qnetwork_skip_forward.1} parent=5 // pred_check
        %p449 = pneg %p448
      $region38: #{qnetwork_skip_forward.1} parent=5 // pred_check_branch
        %451 = sbr.rel (%p449) target = $region40
      $region39: #{qnetwork_skip_forward.1} parent=5 // pred_region
        %s452 = ssub.s32 %s9, 2
        // Predicated region
        $region41: #{qnetwork_skip_forward.1} parent=39 // pred_check
          %p453 = pneg %p85
        $region42: #{qnetwork_skip_forward.1} parent=39 // pred_check_branch
          %455 = sbr.rel (%p453) target = $region44
        $region43: #{qnetwork_skip_forward.1} parent=39 // pred_region
          %s456 = smul.u32 4, %s15
          %p457 = scmp.lt.s32.totalorder %s456, 7
          %s458 = scalar_select %p457, %s456, 7
          %s459 = smul.addr %s458, 4
          %s460 = scalar_lea.vmem %s2, %s459
        $region44: #{qnetwork_skip_forward.1} parent=39 // pred_fallthru
          _
      $region40: #{qnetwork_skip_forward.1} parent=5 // pred_fallthru
        _
    $region6: #{qnetwork_skip_forward.1} parent=1 // loop_footer
      %s13 = sadd.s32 1, %s9
    $region7: #{qnetwork_skip_forward.1} parent=1 // loop_footer_branch
      %8 = sbr.rel target = $region3
    $region8: #{qnetwork_skip_forward.1} parent=1 // loop_exit
      _
    %461 = vsyncpa [#allocation3], 1
    %s462 = scalar_lea.sflag [#allocation3], 1
    %463 = vsyncpa %s462, 1

</llo_original>
